<compile_context>
chip_gen: v7x
topology: tpu7x:2x2x1
jax: 0.10.0
libtpu: 0.0.40
codegen_flags: <defaults>
</compile_context>

<pallas_src>
import functools
from typing import Callable

import jax
import jax.numpy as jnp
from jax.experimental import pallas as pl
from jax.experimental.pallas import tpu as pltpu


# ----------------------------- tiling helpers ------------------------------

_TM_PREF = 512    # rows of x / out per tile (perf review: 256 -> 512)
_TK_PREF = 1024   # hidden (gate/up contraction) per tile (512 -> 1024)
_TJ_PREF = 512    # intermediate per tile (N of gate/up == K of down)
_VMEM_BUDGET_BYTES = 40 << 20   # keeps the kernel safe on v7x (64 MiB VMEM)


def _round_up(x: int, m: int) -> int:
    return (x + m - 1) // m * m


def _choose_tile(size: int, pref: int, align: int) -> tuple[int, int]:
    """Return (tile, padded_size).

    Dims are floored to `align` (>=128 lanes for lane dims).  Sizes above the
    preferred tile are split into ceil(size/pref) blocks with a balanced tile
    (avoids the pathological case of padding 520 -> 1024 when pref == 512).
    """
    size = max(size, align)
    if size <= pref:
        t = _round_up(size, align)
        return t, t
    n_blocks = -(-size // pref)                     # ceil
    t = _round_up(-(-size // n_blocks), align)      # balanced tile
    return t, t * n_blocks


def _pad2(w: jax.Array, rows: int, cols: int) -> jax.Array:
    r, c = w.shape
    if (rows, cols) == (r, c):
        return w
    return jnp.pad(w, ((0, rows - r), (0, cols - c)))


# ------------------------------- fused kernel -------------------------------

def _fused_mlp_kernel(x_ref, wgu_ref, wd_ref, o_ref, acc_gu, acc_y,
                      *, act_fn, tj):
    """One (tm, H_out) output tile.

    Grid axes: i = M block (parallel), j = intermediate block, k = hidden
    (gate/up contraction) block.  x_ref holds ALL K blocks for this M block
    (shape (nk, tm, tk)); wgu_ref is the per-(k, j) merged [gate | up] weight
    tile; wd_ref is the per-j down-projection block (tj, H_out).
    """
    j = pl.program_id(1)
    k = pl.program_id(2)
    nj = pl.num_programs(1)
    nk = pl.num_programs(2)

    @pl.when((j == 0) & (k == 0))
    def _():
        acc_y[...] = jnp.zeros_like(acc_y)

    @pl.when(k == 0)
    def _():
        acc_gu[...] = jnp.zeros_like(acc_gu)

    # One wide MXU issue per step: (tm, tk) @ (tk, 2*tj) -> f32 accumulator.
    acc_gu[...] += jnp.dot(x_ref[k], wgu_ref[...],
                           preferred_element_type=jnp.float32)

    @pl.when(k == nk - 1)
    def _():
        gu = acc_gu[...]
        # SwiGLU epilogue in f32, then bf16 for the down-projection MXU pass.
        h = (act_fn(gu[:, :tj]) * gu[:, tj:]).astype(wd_ref.dtype)
        acc_y[...] += jnp.dot(h, wd_ref[...],
                              preferred_element_type=jnp.float32)

    @pl.when((j == nj - 1) & (k == nk - 1))
    def _():
        o_ref[...] = acc_y[...].astype(o_ref.dtype)


def _fused_mlp_call(x3, wgu_pad, wd_pad, *, tm, tk, tj, act_fn, out_dtype,
                    vmem_limit_bytes):
    """x3: (nk, M_pad, tk) k-major activations; wgu_pad: (K_pad, 2*I_pad)
    per-tile-interleaved merged gate/up weights; wd_pad: (I_pad, O_pad)."""
    nk, M_pad, _ = x3.shape
    K_pad = nk * tk
    I_pad, O_pad = wd_pad.shape
    grid = (M_pad // tm, I_pad // tj, nk)

    w_isz = jnp.dtype(wgu_pad.dtype).itemsize
    out_isz = jnp.dtype(out_dtype).itemsize
    n_m = grid[0]
    cost = pl.CostEstimate(
        flops=2 * M_pad * K_pad * (2 * I_pad) + 2 * M_pad * I_pad * O_pad,
        transcendentals=M_pad * I_pad,
        bytes_accessed=(M_pad * K_pad * w_isz                              # x
                        + n_m * (K_pad * 2 * I_pad + I_pad * O_pad) * w_isz  # weights re-streamed per M block
                        + M_pad * O_pad * out_isz),                        # y
    )

    return pl.pallas_call(
        functools.partial(_fused_mlp_kernel, act_fn=act_fn, tj=tj),
        out_shape=jax.ShapeDtypeStruct((M_pad, O_pad), out_dtype),
        grid_spec=pltpu.PrefetchScalarGridSpec(
            num_scalar_prefetch=0,
            grid=grid,
            in_specs=[
                # x: resident per M block (does not change over j, k).
                pl.BlockSpec((nk, tm, tk), lambda i, j, k: (0, i, 0)),
                # merged [gate | up] weights, streamed per (k, j).
                pl.BlockSpec((tk, 2 * tj), lambda i, j, k: (k, j)),
                # down-projection block, streamed per j.
                pl.BlockSpec((tj, O_pad), lambda i, j, k: (j, 0)),
            ],
            out_specs=pl.BlockSpec((tm, O_pad), lambda i, j, k: (i, 0)),
            scratch_shapes=[pltpu.VMEM((tm, 2 * tj), jnp.float32),   # gate/up acc
                            pltpu.VMEM((tm, O_pad), jnp.float32)],   # output acc
        ),
        compiler_params=pltpu.CompilerParams(
            dimension_semantics=("parallel", "arbitrary", "arbitrary"),
            vmem_limit_bytes=vmem_limit_bytes),
        cost_estimate=cost,
    )(x3, wgu_pad, wd_pad)


# --------------------------------- module ------------------------------------

class MergedMLPPallas:
    """JAX/Pallas equivalent of MergedMLP (bias=False).

    gate_up_proj == MergeParallelLayer(hidden, intermediate, dup_layer=2, ws, rank)
    down_proj    == RowParallelLayer(intermediate, hidden, ws, rank)
    act_fn       == activation on the gate branch (default silu).
    """

    def __init__(self, hidden_size: int, intermediate_size: int,
                 world_size: int = 1, rank: int = 0,
                 act_fn: Callable = jax.nn.silu,
                 param_dtype=jnp.bfloat16, key=None):
        assert intermediate_size % world_size == 0
        self.hidden_size = hidden_size
        self.intermediate_size = intermediate_size
        self.world_size = world_size
        self.rank = rank
        self.act_fn = act_fn
        self.param_dtype = param_dtype

        n_inter = intermediate_size // world_size   # per-rank intermediate
        self.n_inter = n_inter

        key = jax.random.PRNGKey(42) if key is None else key
        kg, kd = jax.random.split(key)

        # MergeParallelLayer weight: nn.Linear(hidden, 2*inter/ws); PyTorch layout
        # (out_features, in_features).  chunk(out, 2, -1): rows [0:n_inter] -> gate.
        bound_gu = 1.0 / (hidden_size ** 0.5)
        w_gu = jax.random.uniform(kg, (2 * n_inter, hidden_size), dtype=jnp.float32,
                                  minval=-bound_gu, maxval=bound_gu)
        w_gate_t = w_gu[:n_inter].T.astype(param_dtype)    # (hidden, n_inter)
        w_up_t = w_gu[n_inter:].T.astype(param_dtype)      # (hidden, n_inter)

        # RowParallelLayer weight: nn.Linear(inter/ws, hidden).
        bound_d = 1.0 / (n_inter ** 0.5)
        w_d = jax.random.uniform(kd, (hidden_size, n_inter), dtype=jnp.float32,
                                 minval=-bound_d, maxval=bound_d)
        w_down_t = w_d.T.astype(param_dtype)               # (n_inter, hidden)

        # Unpadded copies kept for reference checks / export.
        self.w_gate_t, self.w_up_t, self.w_down_t = w_gate_t, w_up_t, w_down_t

        # ------ weight-side tiling (known at init; 128-lane floor everywhere) ----
        self.tk, self.K_pad = _choose_tile(hidden_size, _TK_PREF, 128)
        self.tj, self.I_pad = _choose_tile(n_inter, _TJ_PREF, 128)
        self.O_pad = _round_up(max(hidden_size, 128), 128)

        # ------ one-time pad + per-tile interleave of [gate | up] ---------------
        wg_pad = _pad2(w_gate_t, self.K_pad, self.I_pad)
        wu_pad = _pad2(w_up_t, self.K_pad, self.I_pad)
        n_jb = self.I_pad // self.tj
        wg3 = wg_pad.reshape(self.K_pad, n_jb, self.tj)
        wu3 = wu_pad.reshape(self.K_pad, n_jb, self.tj)
        # block j columns [0:tj] = gate block j, [tj:2*tj] = up block j.
        self.wgu_pad = jnp.concatenate([wg3, wu3], axis=-1).reshape(
            self.K_pad, 2 * self.I_pad)
        self.wd_pad = _pad2(w_down_t, self.I_pad, self.O_pad)

    # Double-buffered inputs + output + f32 scratch, for the given tm.
    def _vmem_needed(self, tm: int, out_itemsize: int) -> int:
        w = jnp.dtype(self.param_dtype).itemsize
        return (2 * tm * self.K_pad * w             # resident x (double buffered)
                + 2 * self.tk * 2 * self.tj * w     # merged gate/up tile
                + 2 * self.tj * self.O_pad * w      # down-proj tile
                + 2 * tm * self.O_pad * out_itemsize  # output tile
                + tm * 2 * self.tj * 4              # gate/up f32 accumulator
                + tm * self.O_pad * 4)              # output f32 accumulator

    def __call__(self, x: jax.Array) -> jax.Array:
        lead = x.shape[:-1]
        H = x.shape[-1]
        assert H == self.hidden_size
        out_dtype = x.dtype
        out_isz = jnp.dtype(out_dtype).itemsize

        x2d = x.reshape(-1, H).astype(self.param_dtype)
        M = x2d.shape[0]

        # Choose tm as large as the VMEM budget allows (weights are re-streamed
        # once per M block, so bigger tm => fewer weight re-reads from HBM).
        tm_pref = min(_TM_PREF, _round_up(M, 16))
        while True:
            tm, M_pad = _choose_tile(M, tm_pref, 16)
            if tm <= 16 or self._vmem_needed(tm, out_isz) <= _VMEM_BUDGET_BYTES:
                break
            tm_pref = max(16, (tm // 2) // 16 * 16)

        needed = self._vmem_needed(tm, out_isz)
        vmem_limit = int(min(max(int(needed * 1.3) + (4 << 20), 32 << 20), 56 << 20))

        # Pad activations, then present them k-major so the kernel can keep the
        # whole K extent resident per M block and index K chunks dynamically.
        if (M_pad, self.K_pad) != (M, H):
            x2d = jnp.pad(x2d, ((0, M_pad - M), (0, self.K_pad - H)))
        nk = self.K_pad // self.tk
        x3 = x2d.reshape(M_pad, nk, self.tk).transpose(1, 0, 2)

        y = _fused_mlp_call(x3, self.wgu_pad, self.wd_pad,
                            tm=tm, tk=self.tk, tj=self.tj,
                            act_fn=self.act_fn, out_dtype=out_dtype,
                            vmem_limit_bytes=vmem_limit)

        y = y[:M, :H]
        # TODO(synk): comm.all_reduce across ranks (jax.lax.psum over a device
        # mesh) when world_size > 1; identity at world_size == 1.
        return y.reshape(*lead, H)


# ----------------------------------- demo -------------------------------------

if __name__ == "__main__":
    # Small shapes consistent with the module:
    #   hidden_size = 32, intermediate_size = 128, world_size = 1, rank = 0
    #   x: (batch=2, seq=8, hidden=32)
    hidden, inter, world_size, rank = 32, 128, 1, 0

    key = jax.random.PRNGKey(0)
    kx, kw = jax.random.split(key)
    x = jax.random.normal(kx, (2, 8, hidden), dtype=jnp.float32)

    mlp = MergedMLPPallas(hidden, inter, world_size, rank,
                          act_fn=jax.nn.silu, param_dtype=jnp.bfloat16, key=kw)

    y = mlp(x)
    y = jax.block_until_ready(y)
    assert y.shape == x.shape and y.dtype == x.dtype

    # Pure-JAX reference reproducing the module math on the same bf16 params.
    xb = x.reshape(-1, hidden).astype(jnp.bfloat16)
    g = jnp.dot(xb, mlp.w_gate_t, preferred_element_type=jnp.float32)
    u = jnp.dot(xb, mlp.w_up_t, preferred_element_type=jnp.float32)
    hb = (jax.nn.silu(g) * u).astype(jnp.bfloat16)
    y_ref = jnp.dot(hb, mlp.w_down_t, preferred_element_type=jnp.float32)
    y_ref = y_ref.astype(x.dtype).reshape(x.shape)

    assert jnp.allclose(y, y_ref, atol=2e-2, rtol=2e-2), (
        float(jnp.max(jnp.abs(y - y_ref))))

    print("KERNEL_OK")
</pallas_src>

<mosaic_0001>
module attributes {stable_mosaic.version = 11 : i64} {
  func.func @_fused_mlp_kernel(%arg0: i32, %arg1: i32, %arg2: i32, %arg3: memref<1x16x128xbf16, #tpu.memory_space<vmem>>, %arg4: memref<128x256xbf16, #tpu.memory_space<vmem>>, %arg5: memref<128x128xbf16, #tpu.memory_space<vmem>>, %arg6: memref<16x128xf32, #tpu.memory_space<vmem>>, %arg7: memref<16x256xf32, #tpu.memory_space<vmem>>, %arg8: memref<16x128xf32, #tpu.memory_space<vmem>>) attributes {dimension_semantics = [#tpu.dimension_semantics<parallel>, #tpu.dimension_semantics<arbitrary>, #tpu.dimension_semantics<arbitrary>], iteration_bounds = array<i64: 1, 1, 1>, scalar_prefetch = 0 : i64, scratch_operands = 2 : i64, tpu.core_type = #tpu.core_type<tc>, window_params = [{transform_indices = @transform_0, window_bounds = array<i64: 1, 16, 128>}, {transform_indices = @transform_1, window_bounds = array<i64: 128, 256>}, {transform_indices = @transform_2, window_bounds = array<i64: 128, 128>}, {transform_indices = @transform_3, window_bounds = array<i64: 16, 128>}]} {
    %c0_i32 = arith.constant 0 : i32
    %0 = arith.cmpi eq, %arg1, %c0_i32 : i32
    %c0_i32_0 = arith.constant 0 : i32
    %1 = arith.cmpi eq, %arg2, %c0_i32_0 : i32
    %2 = arith.andi %0, %1 : i1
    %3 = arith.extui %2 : i1 to i32
    %c0_i32_1 = arith.constant 0 : i32
    %4 = arith.cmpi ne, %3, %c0_i32_1 : i32
    scf.if %4 {
      %cst_16 = arith.constant 0.000000e+00 : f32
      %24 = vector.broadcast %cst_16 : f32 to vector<16x128xf32>
      %c0_17 = arith.constant 0 : index
      %c0_18 = arith.constant 0 : index
      %25 = vector.load %arg8[%c0_17, %c0_18] : memref<16x128xf32, #tpu.memory_space<vmem>>, vector<16x128xf32>
      tpu.vector_store %arg8[%c0_17, %c0_18], %24 {strides = array<i32>} : memref<16x128xf32, #tpu.memory_space<vmem>>, vector<16x128xf32>,
    } else {
    }
    %c0_i32_2 = arith.constant 0 : i32
    %5 = arith.cmpi eq, %arg2, %c0_i32_2 : i32
    %6 = arith.extui %5 : i1 to i32
    %c0_i32_3 = arith.constant 0 : i32
    %7 = arith.cmpi ne, %6, %c0_i32_3 : i32
    scf.if %7 {
      %cst_16 = arith.constant 0.000000e+00 : f32
      %24 = vector.broadcast %cst_16 : f32 to vector<16x256xf32>
      %c0_17 = arith.constant 0 : index
      %c0_18 = arith.constant 0 : index
      %25 = vector.load %arg7[%c0_17, %c0_18] : memref<16x256xf32, #tpu.memory_space<vmem>>, vector<16x256xf32>
      tpu.vector_store %arg7[%c0_17, %c0_18], %24 {strides = array<i32>} : memref<16x256xf32, #tpu.memory_space<vmem>>, vector<16x256xf32>,
    } else {
    }
    %c0 = arith.constant 0 : index
    %c0_4 = arith.constant 0 : index
    %8 = vector.load %arg7[%c0, %c0_4] : memref<16x256xf32, #tpu.memory_space<vmem>>, vector<16x256xf32>
    %9 = arith.index_cast %arg2 : i32 to index
    %c0_5 = arith.constant 0 : index
    %c0_6 = arith.constant 0 : index
    %10 = vector.load %arg3[%9, %c0_5, %c0_6] : memref<1x16x128xbf16, #tpu.memory_space<vmem>>, vector<1x16x128xbf16>
    %11 = vector.shape_cast %10 : vector<1x16x128xbf16> to vector<16x128xbf16>
    %c0_7 = arith.constant 0 : index
    %c0_8 = arith.constant 0 : index
    %12 = vector.load %arg4[%c0_7, %c0_8] : memref<128x256xbf16, #tpu.memory_space<vmem>>, vector<128x256xbf16>
    %cst = arith.constant dense<0.000000e+00> : vector<16x256xf32>
    %13 = tpu.matmul %11, %12, %cst {dimension_numbers = #tpu.dot_dimension_numbers<[1], [0], [0], [1], [0, 0, 1, 1], [], []>} : vector<16x128xbf16>, vector<128x256xbf16>, vector<16x256xf32> -> vector<16x256xf32>
    %14 = arith.addf %8, %13 : vector<16x256xf32>
    %c0_9 = arith.constant 0 : index
    %c0_10 = arith.constant 0 : index
    %15 = vector.load %arg7[%c0_9, %c0_10] : memref<16x256xf32, #tpu.memory_space<vmem>>, vector<16x256xf32>
    tpu.vector_store %arg7[%c0_9, %c0_10], %14 {strides = array<i32>} : memref<16x256xf32, #tpu.memory_space<vmem>>, vector<16x256xf32>,
    %c0_i32_11 = arith.constant 0 : i32
    %16 = arith.cmpi eq, %arg2, %c0_i32_11 : i32
    %17 = arith.extui %16 : i1 to i32
    %c0_i32_12 = arith.constant 0 : i32
    %18 = arith.cmpi ne, %17, %c0_i32_12 : i32
    scf.if %18 {
      %c0_16 = arith.constant 0 : index
      %c0_17 = arith.constant 0 : index
      %24 = vector.load %arg7[%c0_16, %c0_17] : memref<16x256xf32, #tpu.memory_space<vmem>>, vector<16x256xf32>
      %25 = vector.extract_strided_slice %24 {offsets = [0, 0], sizes = [16, 128], strides = [1, 1]} : vector<16x256xf32> to vector<16x128xf32>
      %26 = arith.negf %25 : vector<16x128xf32>
      %27 = math.exp %26 : vector<16x128xf32>
      %cst_18 = arith.constant 1.000000e+00 : f32
      %28 = vector.broadcast %cst_18 : f32 to vector<16x128xf32>
      %29 = arith.addf %28, %27 : vector<16x128xf32>
      %30 = arith.divf %28, %29 : vector<16x128xf32>
      %31 = arith.mulf %25, %30 : vector<16x128xf32>
      %32 = vector.extract_strided_slice %24 {offsets = [0, 128], sizes = [16, 128], strides = [1, 1]} : vector<16x256xf32> to vector<16x128xf32>
      %33 = arith.mulf %31, %32 : vector<16x128xf32>
      %34 = arith.truncf %33 : vector<16x128xf32> to vector<16x128xbf16>
      %c0_19 = arith.constant 0 : index
      %c0_20 = arith.constant 0 : index
      %35 = vector.load %arg8[%c0_19, %c0_20] : memref<16x128xf32, #tpu.memory_space<vmem>>, vector<16x128xf32>
      %c0_21 = arith.constant 0 : index
      %c0_22 = arith.constant 0 : index
      %36 = vector.load %arg5[%c0_21, %c0_22] : memref<128x128xbf16, #tpu.memory_space<vmem>>, vector<128x128xbf16>
      %cst_23 = arith.constant dense<0.000000e+00> : vector<16x128xf32>
      %37 = tpu.matmul %34, %36, %cst_23 {dimension_numbers = #tpu.dot_dimension_numbers<[1], [0], [0], [1], [0, 0, 1, 1], [], []>} : vector<16x128xbf16>, vector<128x128xbf16>, vector<16x128xf32> -> vector<16x128xf32>
      %38 = arith.addf %35, %37 : vector<16x128xf32>
      %c0_24 = arith.constant 0 : index
      %c0_25 = arith.constant 0 : index
      %39 = vector.load %arg8[%c0_24, %c0_25] : memref<16x128xf32, #tpu.memory_space<vmem>>, vector<16x128xf32>
      tpu.vector_store %arg8[%c0_24, %c0_25], %38 {strides = array<i32>} : memref<16x128xf32, #tpu.memory_space<vmem>>, vector<16x128xf32>,
    } else {
    }
    %c0_i32_13 = arith.constant 0 : i32
    %19 = arith.cmpi eq, %arg1, %c0_i32_13 : i32
    %c0_i32_14 = arith.constant 0 : i32
    %20 = arith.cmpi eq, %arg2, %c0_i32_14 : i32
    %21 = arith.andi %19, %20 : i1
    %22 = arith.extui %21 : i1 to i32
    %c0_i32_15 = arith.constant 0 : i32
    %23 = arith.cmpi ne, %22, %c0_i32_15 : i32
    scf.if %23 {
      %c0_16 = arith.constant 0 : index
      %c0_17 = arith.constant 0 : index
      %24 = vector.load %arg8[%c0_16, %c0_17] : memref<16x128xf32, #tpu.memory_space<vmem>>, vector<16x128xf32>
      %c0_18 = arith.constant 0 : index
      %c0_19 = arith.constant 0 : index
      %25 = vector.load %arg6[%c0_18, %c0_19] : memref<16x128xf32, #tpu.memory_space<vmem>>, vector<16x128xf32>
      tpu.vector_store %arg6[%c0_18, %c0_19], %24 {strides = array<i32>} : memref<16x128xf32, #tpu.memory_space<vmem>>, vector<16x128xf32>,
    } else {
    }
    return
  }
  func.func @transform_0(%arg0: i32, %arg1: i32, %arg2: i32) -> (i32, i32, i32) {
    %c0_i32 = arith.constant 0 : i32
    %c0_i32_0 = arith.constant 0 : i32
    %c0_i32_1 = arith.constant 0 : i32
    return %c0_i32, %arg0, %c0_i32_0 : i32, i32, i32
  }
  func.func @transform_1(%arg0: i32, %arg1: i32, %arg2: i32) -> (i32, i32) {
    %c0_i32 = arith.constant 0 : i32
    return %arg2, %arg1 : i32, i32
  }
  func.func @transform_2(%arg0: i32, %arg1: i32, %arg2: i32) -> (i32, i32) {
    %c0_i32 = arith.constant 0 : i32
    %c0_i32_0 = arith.constant 0 : i32
    return %arg1, %c0_i32 : i32, i32
  }
  func.func @transform_3(%arg0: i32, %arg1: i32, %arg2: i32) -> (i32, i32) {
    %c0_i32 = arith.constant 0 : i32
    %c0_i32_0 = arith.constant 0 : i32
    return %arg0, %c0_i32 : i32, i32
  }
}

</mosaic_0001>

<llo_original>
// kernel: tpu_custom_call.1
$region0: #{tpu_custom_call.1}
  #allocation0 [shape = 'u32[]', space=smem, size = 0x4, offset = 0x4, fixed_abs, tag = 'smem constant byte address 0x4 - core index']
  #allocation1 [shape = 'u32[144,128]{1,0:T(1,128)}', space=vmem, size = 0x12000, scoped, tag = 'internal scratch']
  #allocation2 [shape = 'f32[16,256]{1,0:T(8,128)}', space=vmem, size = 0x4000, scoped, tag = 'scratch operand']
  #allocation3 [shape = 'f32[16,128]{1,0:T(8,128)}', space=vmem, size = 0x2000, scoped, tag = 'scratch operand']
  %s0 = inlined_call_operand.hbm [shape: bf16[1,16,128], index: 0, kind: input, shape index: {}]
  %s1 = inlined_call_operand.hbm [shape: bf16[128,256], index: 1, kind: input, shape index: {}]
  %s2 = inlined_call_operand.hbm [shape: bf16[128,128], index: 2, kind: input, shape index: {}]
  %s3 = inlined_call_operand.hbm [shape: f32[16,128], index: 3, kind: output, shape index: {}]
  %s4 = sld [smem:[#allocation0]]
  $region50: #{tpu_custom_call.1} parent=0
    _
  %s6 = ssub.s32 1, %s4
  %s7 = scalar_select 0, %s6, %s4
  $region1: #{tpu_custom_call.1} parent=0
    #allocation4 [shape = 'u8[4096]{0}', space=vmem, size = 0x1000, scoped, tag = 'input window, operand 0, single buffered']
    #allocation5 [shape = 's32[1]{0}', space=sflag, size = 0x4, scoped, tag = 'scoped memory for tpu_custom_call.1']
    #allocation6 [shape = 's32[1]{0}', space=sflag, size = 0x4, scoped, tag = 'scoped memory for tpu_custom_call.1']
    #allocation7 [shape = 'u8[65536]{0}', space=vmem, size = 0x10000, scoped, tag = 'input window, operand 1, single buffered']
    #allocation8 [shape = 's32[1]{0}', space=sflag, size = 0x4, scoped, tag = 'scoped memory for tpu_custom_call.1']
    #allocation9 [shape = 'u8[32768]{0}', space=vmem, size = 0x8000, scoped, tag = 'input window, operand 2, single buffered']
    #allocation10 [shape = 'u8[8192]{0}', space=vmem, size = 0x2000, scoped, tag = 'output window, operand 0, single buffered']
    %8 = vsyncpa [#allocation5], 0
    %9 = vsyncpa [#allocation8], 0
    %10 = vsyncpa [#allocation6], 0
    // Predicated region
    $region2: #{tpu_custom_call.1} parent=1 // pred_check
      _
    $region3: #{tpu_custom_call.1} parent=1 // pred_check_branch
      %12 = sbr.rel (0) target = $region5
    $region4: #{tpu_custom_call.1} parent=1 // pred_region
      %s14 = ssub.s32 128, 128
      %15 = vsyncadd [#allocation5], %s14
      %s16 = sshll.u32 [#allocation4], 4
      %s17 = int_to_ptr.vmem [resolvable:$true] %s16
      %22 = dma.hbm_to_vmem [thread:$0]  %s0, 128, %s17, [#allocation5], 64, 64, 4
    $region5: #{tpu_custom_call.1} parent=1 // pred_fallthru
      _
    // Predicated region
    $region6: #{tpu_custom_call.1} parent=1 // pred_check
      _
    $region7: #{tpu_custom_call.1} parent=1 // pred_check_branch
      %24 = sbr.rel (0) target = $region9
    $region8: #{tpu_custom_call.1} parent=1 // pred_region
      %s26 = ssub.s32 2048, 2048
      %27 = vsyncadd [#allocation8], %s26
      %s28 = sshll.u32 [#allocation7], 4
      %s29 = int_to_ptr.vmem [resolvable:$true] %s28
      %34 = dma.hbm_to_vmem [thread:$0]  %s1, 2048, %s29, [#allocation8], 128, 128, 8
    $region9: #{tpu_custom_call.1} parent=1 // pred_fallthru
      _
    // Predicated region
    $region10: #{tpu_custom_call.1} parent=1 // pred_check
      _
    $region11: #{tpu_custom_call.1} parent=1 // pred_check_branch
      %36 = sbr.rel (0) target = $region13
    $region12: #{tpu_custom_call.1} parent=1 // pred_region
      %s38 = ssub.s32 1024, 1024
      %39 = vsyncadd [#allocation8], %s38
      %s40 = sshll.u32 [#allocation9], 4
      %s41 = int_to_ptr.vmem [resolvable:$true] %s40
      %46 = dma.hbm_to_vmem [thread:$0]  %s2, 1024, %s41, [#allocation8], 64, 64, 4
    $region13: #{tpu_custom_call.1} parent=1 // pred_fallthru
      _
    // Predicated region
    $region14: #{tpu_custom_call.1} parent=1 // pred_check
      _
    $region15: #{tpu_custom_call.1} parent=1 // pred_check_branch
      %48 = sbr.rel (0) target = $region17
    $region16: #{tpu_custom_call.1} parent=1 // pred_region
      %49 = dma.done [#allocation5], 128
    $region17: #{tpu_custom_call.1} parent=1 // pred_fallthru
      _
    // Predicated region
    $region18: #{tpu_custom_call.1} parent=1 // pred_check
      _
    $region19: #{tpu_custom_call.1} parent=1 // pred_check_branch
      %51 = sbr.rel (0) target = $region21
    $region20: #{tpu_custom_call.1} parent=1 // pred_region
      %52 = dma.done [#allocation8], 2048
    $region21: #{tpu_custom_call.1} parent=1 // pred_fallthru
      _
    // Predicated region
    $region22: #{tpu_custom_call.1} parent=1 // pred_check
      _
    $region23: #{tpu_custom_call.1} parent=1 // pred_check_branch
      %54 = sbr.rel (0) target = $region25
    $region24: #{tpu_custom_call.1} parent=1 // pred_region
      %55 = dma.done [#allocation8], 1024
    $region25: #{tpu_custom_call.1} parent=1 // pred_fallthru
      _
    %p57 = scmp.eq.s32.totalorder 0, 0
    %p58 = scmp.eq.s32.totalorder 0, 0
    %p59 = pnand %p57, %p58
    %p60 = pneg %p59
    // Predicated region
    $region26: #{tpu_custom_call.1} parent=1 // pred_check
      _
    $region27: #{tpu_custom_call.1} parent=1 // pred_check_branch
      %62 = sbr.rel (%p59) target = $region29
    $region28: #{tpu_custom_call.1} parent=1 // pred_region
      %63 = vst [vmem:[#allocation3] sm:$0xff] 0.0
      %64 = vst [vmem:[#allocation3 + $0x8] sm:$0xff] 0.0
    $region29: #{tpu_custom_call.1} parent=1 // pred_fallthru
      _
    // Predicated region
    $region30: #{tpu_custom_call.1} parent=1 // pred_check
      %p65 = pneg %p58
    $region31: #{tpu_custom_call.1} parent=1 // pred_check_branch
      %67 = sbr.rel (%p65) target = $region33
    $region32: #{tpu_custom_call.1} parent=1 // pred_region
      %68 = vst [vmem:[#allocation2] sm:$0xff] 0.0
      %69 = vst [vmem:[#allocation2 + $0x8] sm:$0xff] 0.0
      %70 = vst [vmem:[#allocation2 + $0x10] sm:$0xff] 0.0
      %71 = vst [vmem:[#allocation2 + $0x18] sm:$0xff] 0.0
    $region33: #{tpu_custom_call.1} parent=1 // pred_fallthru
      _
    %v72 = vld [vmem:[#allocation2] sm:$0xff]
    %v73 = vld [vmem:[#allocation2 + $0x8] sm:$0xff]
    %v74 = vld [vmem:[#allocation2 + $0x10] sm:$0xff]
    %v75 = vld [vmem:[#allocation2 + $0x18] sm:$0xff]
    %s76 = smul.u32 0, 2
    %s77 = smul.addr %s76, 4
    %s78 = scalar_lea.vmem [#allocation4], %s77
    %v79 = vld [vmem:[%s78] sm:$0xf]
    %v80 = vld [vmem:[%s78 + $0x4] sm:$0xf]
    %v81 = vld [vmem:[#allocation7] sm:$0xff]
    %v82 = vld [vmem:[#allocation7 + $0x8] sm:$0xff]
    %v83 = vld [vmem:[#allocation7 + $0x10] sm:$0xff]
    %v84 = vld [vmem:[#allocation7 + $0x18] sm:$0xff]
    %v85 = vld [vmem:[#allocation7 + $0x20] sm:$0xff]
    %v86 = vld [vmem:[#allocation7 + $0x28] sm:$0xff]
    %v87 = vld [vmem:[#allocation7 + $0x30] sm:$0xff]
    %v88 = vld [vmem:[#allocation7 + $0x38] sm:$0xff]
    %v89 = vld [vmem:[#allocation7 + $0x40] sm:$0xff]
    %v90 = vld [vmem:[#allocation7 + $0x48] sm:$0xff]
    %v91 = vld [vmem:[#allocation7 + $0x50] sm:$0xff]
    %v92 = vld [vmem:[#allocation7 + $0x58] sm:$0xff]
    %v93 = vld [vmem:[#allocation7 + $0x60] sm:$0xff]
    %v94 = vld [vmem:[#allocation7 + $0x68] sm:$0xff]
    %v95 = vld [vmem:[#allocation7 + $0x70] sm:$0xff]
    %v96 = vld [vmem:[#allocation7 + $0x78] sm:$0xff]
    %v99 = vunpack.c.l.b16 %v79
    %v100 = vunpack.c.l.b16 %v80
    %v101 = vpack.c.b16 %v100, %v99
    %v119 = vunpack.c.l.b16 %v81
    %v120 = vunpack.c.h.b16 %v81
    %v121 = vunpack.c.l.b16 %v82
    %v122 = vunpack.c.h.b16 %v82
    %v123 = vunpack.c.l.b16 %v83
    %v124 = vunpack.c.h.b16 %v83
    %v125 = vunpack.c.l.b16 %v84
    %v126 = vunpack.c.h.b16 %v84
    %v127 = vunpack.c.l.b16 %v85
    %v128 = vunpack.c.h.b16 %v85
    %v129 = vunpack.c.l.b16 %v86
    %v130 = vunpack.c.h.b16 %v86
    %v131 = vunpack.c.l.b16 %v87
    %v132 = vunpack.c.h.b16 %v87
    %v133 = vunpack.c.l.b16 %v88
    %v134 = vunpack.c.h.b16 %v88
    %v135 = vunpack.c.l.b16 %v89
    %v136 = vunpack.c.h.b16 %v89
    %v137 = vunpack.c.l.b16 %v90
    %v138 = vunpack.c.h.b16 %v90
    %v139 = vunpack.c.l.b16 %v91
    %v140 = vunpack.c.h.b16 %v91
    %v141 = vunpack.c.l.b16 %v92
    %v142 = vunpack.c.h.b16 %v92
    %v143 = vunpack.c.l.b16 %v93
    %v144 = vunpack.c.h.b16 %v93
    %v145 = vunpack.c.l.b16 %v94
    %v146 = vunpack.c.h.b16 %v94
    %v147 = vunpack.c.l.b16 %v95
    %v148 = vunpack.c.h.b16 %v95
    %v149 = vunpack.c.l.b16 %v96
    %v150 = vunpack.c.h.b16 %v96
    %v151 = vpack.c.b16 %v121, %v119
    %v152 = vpack.c.b16 %v122, %v120
    %v153 = vpack.c.b16 %v125, %v123
    %v154 = vpack.c.b16 %v126, %v124
    %v155 = vpack.c.b16 %v129, %v127
    %v156 = vpack.c.b16 %v130, %v128
    %v157 = vpack.c.b16 %v133, %v131
    %v158 = vpack.c.b16 %v134, %v132
    %v159 = vpack.c.b16 %v137, %v135
    %v160 = vpack.c.b16 %v138, %v136
    %v161 = vpack.c.b16 %v141, %v139
    %v162 = vpack.c.b16 %v142, %v140
    %v163 = vpack.c.b16 %v145, %v143
    %v164 = vpack.c.b16 %v146, %v144
    %v165 = vpack.c.b16 %v149, %v147
    %v166 = vpack.c.b16 %v150, %v148
    %183 = vmatprep.subr.bf16.mxu0 %v152
    %184 = vmatpush1.bf16.msra.mxu0 %v151
    %185 = vmatprep.subr.bf16.mxu0 %v154
    %186 = vmatpush1.bf16.msra.mxu0 %v153
    %187 = vmatprep.subr.bf16.mxu0 %v156
    %188 = vmatpush1.bf16.msra.mxu0 %v155
    %189 = vmatprep.subr.bf16.mxu0 %v158
    %190 = vmatpush1.bf16.msra.mxu0 %v157
    %191 = vmatprep.subr.bf16.mxu0 %v160
    %192 = vmatpush1.bf16.msra.mxu0 %v159
    %193 = vmatprep.subr.bf16.mxu0 %v162
    %194 = vmatpush1.bf16.msra.mxu0 %v161
    %195 = vmatprep.subr.bf16.mxu0 %v164
    %196 = vmatpush1.bf16.msra.mxu0 %v163
    %197 = vmatprep.subr.bf16.mxu0 %v166
    %198 = vmatpush1.bf16.msra.mxu0 %v165
    %199 = vmatprep.subr.bf16.mxu0 0
    %200 = vmatpush1.bf16.msra.mxu0 0
    %201 = vmatprep.subr.bf16.mxu0 0
    %202 = vmatpush1.bf16.msra.mxu0 0
    %203 = vmatprep.subr.bf16.mxu0 0
    %204 = vmatpush1.bf16.msra.mxu0 0
    %205 = vmatprep.subr.bf16.mxu0 0
    %206 = vmatpush1.bf16.msra.mxu0 0
    %207 = vmatprep.subr.bf16.mxu0 0
    %208 = vmatpush1.bf16.msra.mxu0 0
    %209 = vmatprep.subr.bf16.mxu0 0
    %210 = vmatpush1.bf16.msra.mxu0 0
    %211 = vmatprep.subr.bf16.mxu0 0
    %212 = vmatpush1.bf16.msra.mxu0 0
    %213 = vmatprep.subr.bf16.mxu0 0
    %214 = vmatpush1.bf16.msra.mxu0 0
    %215 = vmatprep.mubr.bf16.mxu0 0
    %216 = vmatmul.mubr.bf16.gmra.mrb[0].mxu0 %v101
    %v217 = vpop.f32.mrb[0].mxu0
    %v218 = vadd.f32 0.0, %v217
    %v219 = vpop.f32.mrb[0].mxu0
    %v220 = vadd.f32 0.0, %v219
    %v221 = vpop.f32.mrb[0].mxu0
    %v222 = vadd.f32 0.0, %v221
    %v223 = vpop.f32.mrb[0].mxu0
    %v224 = vadd.f32 0.0, %v223
    %225 = vdwg.mxu0
    %v226 = vadd.f32 %v72, %v218
    %v227 = vadd.f32 %v73, %v220
    %v228 = vadd.f32 %v74, %v222
    %v229 = vadd.f32 %v75, %v224
    %230 = vst [vmem:[#allocation2] sm:$0xff] %v226
    %231 = vst [vmem:[#allocation2 + $0x8] sm:$0xff] %v227
    %232 = vst [vmem:[#allocation2 + $0x10] sm:$0xff] %v228
    %233 = vst [vmem:[#allocation2 + $0x18] sm:$0xff] %v229
    // Predicated region
    $region34: #{tpu_custom_call.1} parent=1 // pred_check
      %p234 = pneg %p58
    $region35: #{tpu_custom_call.1} parent=1 // pred_check_branch
      %236 = sbr.rel (%p234) target = $region37
    $region36: #{tpu_custom_call.1} parent=1 // pred_region
      %v237 = vld [vmem:[#allocation2] sm:$0xff]
      %v238 = vld [vmem:[#allocation2 + $0x8] sm:$0xff]
      %v239 = vld [vmem:[#allocation2 + $0x10] sm:$0xff]
      %v240 = vld [vmem:[#allocation2 + $0x18] sm:$0xff]
      %v241 = vxor.u32 %v237, 2147483648
      %v242 = vxor.u32 %v239, 2147483648
      %v243 = vmul.f32 %v241, 1.442695
      %v244 = vpow.pop %v243
      %v245 = vmul.f32 %v242, 1.442695
      %v246 = vpow.pop %v245
      %v247 = vadd.f32 %v244, 1.0
      %v248 = vadd.f32 %v246, 1.0
      %v249 = vrcp.pop %v247
      %v250 = vmul.f32 1.0, %v249
      %v251 = vrcp.pop %v248
      %v252 = vmul.f32 1.0, %v251
      %v253 = vmul.f32 %v237, %v250
      %v254 = vmul.f32 %v239, %v252
      %v255 = vmul.f32 %v253, %v238
      %v256 = vmul.f32 %v254, %v240
      %v257 = vpack.c.bf16 %v256, %v255
      %v258 = vld [vmem:[#allocation3] sm:$0xff]
      %v259 = vld [vmem:[#allocation3 + $0x8] sm:$0xff]
      %v260 = vld [vmem:[#allocation9] sm:$0xf]
      %v261 = vld [vmem:[#allocation9 + $0x4] sm:$0xf]
      %v262 = vld [vmem:[#allocation9 + $0x8] sm:$0xf]
      %v263 = vld [vmem:[#allocation9 + $0xc] sm:$0xf]
      %v264 = vld [vmem:[#allocation9 + $0x10] sm:$0xf]
      %v265 = vld [vmem:[#allocation9 + $0x14] sm:$0xf]
      %v266 = vld [vmem:[#allocation9 + $0x18] sm:$0xf]
      %v267 = vld [vmem:[#allocation9 + $0x1c] sm:$0xf]
      %v268 = vld [vmem:[#allocation9 + $0x20] sm:$0xf]
      %v269 = vld [vmem:[#allocation9 + $0x24] sm:$0xf]
      %v270 = vld [vmem:[#allocation9 + $0x28] sm:$0xf]
      %v271 = vld [vmem:[#allocation9 + $0x2c] sm:$0xf]
      %v272 = vld [vmem:[#allocation9 + $0x30] sm:$0xf]
      %v273 = vld [vmem:[#allocation9 + $0x34] sm:$0xf]
      %v274 = vld [vmem:[#allocation9 + $0x38] sm:$0xf]
      %v275 = vld [vmem:[#allocation9 + $0x3c] sm:$0xf]
      %v292 = vunpack.c.l.b16 %v260
      %v293 = vunpack.c.l.b16 %v261
      %v294 = vunpack.c.l.b16 %v262
      %v295 = vunpack.c.l.b16 %v263
      %v296 = vunpack.c.l.b16 %v264
      %v297 = vunpack.c.l.b16 %v265
      %v298 = vunpack.c.l.b16 %v266
      %v299 = vunpack.c.l.b16 %v267
      %v300 = vunpack.c.l.b16 %v268
      %v301 = vunpack.c.l.b16 %v269
      %v302 = vunpack.c.l.b16 %v270
      %v303 = vunpack.c.l.b16 %v271
      %v304 = vunpack.c.l.b16 %v272
      %v305 = vunpack.c.l.b16 %v273
      %v306 = vunpack.c.l.b16 %v274
      %v307 = vunpack.c.l.b16 %v275
      %v308 = vpack.c.b16 %v293, %v292
      %v309 = vpack.c.b16 %v295, %v294
      %v310 = vpack.c.b16 %v297, %v296
      %v311 = vpack.c.b16 %v299, %v298
      %v312 = vpack.c.b16 %v301, %v300
      %v313 = vpack.c.b16 %v303, %v302
      %v314 = vpack.c.b16 %v305, %v304
      %v315 = vpack.c.b16 %v307, %v306
      %324 = vmatprep.subr.bf16.mxu0 0
      %325 = vmatpush1.bf16.msra.mxu0 %v308
      %326 = vmatprep.subr.bf16.mxu0 0
      %327 = vmatpush1.bf16.msra.mxu0 %v309
      %328 = vmatprep.subr.bf16.mxu0 0
      %329 = vmatpush1.bf16.msra.mxu0 %v310
      %330 = vmatprep.subr.bf16.mxu0 0
      %331 = vmatpush1.bf16.msra.mxu0 %v311
      %332 = vmatprep.subr.bf16.mxu0 0
      %333 = vmatpush1.bf16.msra.mxu0 %v312
      %334 = vmatprep.subr.bf16.mxu0 0
      %335 = vmatpush1.bf16.msra.mxu0 %v313
      %336 = vmatprep.subr.bf16.mxu0 0
      %337 = vmatpush1.bf16.msra.mxu0 %v314
      %338 = vmatprep.subr.bf16.mxu0 0
      %339 = vmatpush1.bf16.msra.mxu0 %v315
      %340 = vmatprep.subr.bf16.mxu0 0
      %341 = vmatpush1.bf16.msra.mxu0 0
      %342 = vmatprep.subr.bf16.mxu0 0
      %343 = vmatpush1.bf16.msra.mxu0 0
      %344 = vmatprep.subr.bf16.mxu0 0
      %345 = vmatpush1.bf16.msra.mxu0 0
      %346 = vmatprep.subr.bf16.mxu0 0
      %347 = vmatpush1.bf16.msra.mxu0 0
      %348 = vmatprep.subr.bf16.mxu0 0
      %349 = vmatpush1.bf16.msra.mxu0 0
      %350 = vmatprep.subr.bf16.mxu0 0
      %351 = vmatpush1.bf16.msra.mxu0 0
      %352 = vmatprep.subr.bf16.mxu0 0
      %353 = vmatpush1.bf16.msra.mxu0 0
      %354 = vmatprep.subr.bf16.mxu0 0
      %355 = vmatpush1.bf16.msra.mxu0 0
      %356 = vmatprep.mubr.bf16.mxu0 0
      %357 = vmatmul.mubr.bf16.gmra.mrb[0].mxu0 %v257
      %v358 = vpop.f32.mrb[0].mxu0
      %v359 = vadd.f32 0.0, %v358
      %v360 = vpop.f32.mrb[0].mxu0
      %v361 = vpop.f32.mrb[0].mxu0
      %v362 = vadd.f32 0.0, %v361
      %v363 = vpop.f32.mrb[0].mxu0
      %364 = vdwg.mxu0
      %v365 = vadd.f32 %v258, %v359
      %v366 = vadd.f32 %v259, %v362
      %367 = vst [vmem:[#allocation3] sm:$0xff] %v365
      %368 = vst [vmem:[#allocation3 + $0x8] sm:$0xff] %v366
    $region37: #{tpu_custom_call.1} parent=1 // pred_fallthru
      _
    // Predicated region
    $region38: #{tpu_custom_call.1} parent=1 // pred_check
      _
    $region39: #{tpu_custom_call.1} parent=1 // pred_check_branch
      %370 = sbr.rel (%p59) target = $region41
    $region40: #{tpu_custom_call.1} parent=1 // pred_region
      %v371 = vld [vmem:[#allocation3] sm:$0xff]
      %v372 = vld [vmem:[#allocation3 + $0x8] sm:$0xff]
      %373 = vst [vmem:[#allocation10] sm:$0xff] %v371
      %374 = vst [vmem:[#allocation10 + $0x8] sm:$0xff] %v372
    $region41: #{tpu_custom_call.1} parent=1 // pred_fallthru
      _
    // Predicated region
    $region42: #{tpu_custom_call.1} parent=1 // pred_check
      _
    $region43: #{tpu_custom_call.1} parent=1 // pred_check_branch
      %376 = sbr.rel (0) target = $region45
    $region44: #{tpu_custom_call.1} parent=1 // pred_region
      %s378 = ssub.s32 256, 256
      %379 = vsyncadd [#allocation6], %s378
      %s380 = sshll.u32 [#allocation10], 4
      %s381 = int_to_ptr.vmem [resolvable:$true] %s380
      %386 = dma.vmem_to_hbm [thread:$0]  %s381, 256, %s3, [#allocation6], 128, 128, 8
    $region45: #{tpu_custom_call.1} parent=1 // pred_fallthru
      _
    // Predicated region
    $region46: #{tpu_custom_call.1} parent=1 // pred_check
      _
    $region47: #{tpu_custom_call.1} parent=1 // pred_check_branch
      %388 = sbr.rel (0) target = $region49
    $region48: #{tpu_custom_call.1} parent=1 // pred_region
      %389 = dma.done [#allocation6], 256
    $region49: #{tpu_custom_call.1} parent=1 // pred_fallthru
      _
    %390 = vsyncpa [#allocation5], 1
    %391 = vsyncpa [#allocation8], 1
    %392 = vsyncpa [#allocation6], 1

</llo_original>
